<compile_context>
chip_gen: v7x
topology: tpu7x:2x2x1
jax: 0.10.0
libtpu: 0.0.40
codegen_flags: <defaults>
</compile_context>

<pallas_src>
import math

import jax
import jax.numpy as jnp
from jax.experimental import pallas as pl
from jax.experimental.pallas import tpu as pltpu


_SMALL_OUTPUT_BYTES = 512 << 10      # below this, plain jnp.broadcast_to wins


def _expand_kernel(x_ref, o_ref):
    # The only "compute" in Expand: a broadcasted store of the output tile.
    o_ref[...] = jnp.broadcast_to(x_ref[...], o_ref.shape)


def _gen_policy():
    """Per-generation tile-size / VMEM policy."""
    kind = ""
    try:
        kind = jax.devices()[0].device_kind.lower()
    except Exception:
        pass
    if "v7" in kind:
        # 2 TCs, ~3.2 TB/s, 64 MiB VMEM: big tiles, bounded double-buffering.
        return dict(target=6 << 20, max_tile=8 << 20, min_tile=2 << 20,
                    vmem_cap=44 << 20, cores=2)
    if "v6" in kind:
        # 128 MiB VMEM, ~1.4 TB/s: big tiles, generous scoped limit.
        return dict(target=6 << 20, max_tile=8 << 20, min_tile=2 << 20,
                    vmem_cap=64 << 20, cores=1)
    # v5e / unknown: ~0.82 TB/s; stay conservative.
    return dict(target=3 << 20, max_tile=4 << 20, min_tile=1 << 20,
                vmem_cap=32 << 20, cores=1)


def _sublane_multiple(itemsize):
    # Sub-32-bit dtypes pack along sublanes: keep blocks at full packed height.
    if itemsize >= 4:
        return 8
    if itemsize == 2:
        return 16
    return 32


def _coalesce(x_shape, tgt):
    """Merge consecutive dims that share a broadcast status (keep / bcast)."""
    groups = []  # [x_prod, tgt_prod, status]
    for xs, ts in zip(x_shape, tgt):
        if ts == 1:
            st = "any"
        elif xs == 1:
            st = "bcast"
        else:
            st = "keep"
        if groups:
            pxs, pts, pst = groups[-1]
            if pst == "any" or st == "any" or pst == st:
                groups[-1] = [pxs * xs, pts * ts, st if pst == "any" else pst]
                continue
        groups.append([xs, ts, st])
    if not groups:
        groups = [[1, 1, "any"]]
    return (tuple(g[0] for g in groups), tuple(g[1] for g in groups))


def _fold_plan(x_c, tgt_c):
    """Plan folding a trailing (broadcast B, keep L<128) pair into B*L lanes."""
    if len(tgt_c) < 2:
        return None
    L = tgt_c[-1]
    B = tgt_c[-2]
    if not (0 < L < 128 and x_c[-1] == L and x_c[-2] == 1 and B > 1):
        return None
    total_exp = math.prod(tgt_c) // max(1, math.prod(x_c))
    f_cap = max(1, total_exp // 4)      # pre-tile traffic <= ~50% of output
    f_min = 128 // math.gcd(L, 128)     # smallest F with (F*L) % 128 == 0
    f = f_min
    while f * L < 512 and 2 * f * L <= 2048 and 2 * f <= f_cap and 2 * f <= B:
        f *= 2
    f = min(f, B)
    if f > f_cap:
        return None
    if f < B and (f * L) % 128 != 0:
        return None
    return dict(F=f, L=L, B=B)


def _pick_lane_block(L, itemsize, target_bytes, sub_mult):
    """Lane (last-dim) block: full dim if it fits, else a 128-multiple budget."""
    lane_budget = (target_bytes // max(1, sub_mult * itemsize)) // 128 * 128
    lane_budget = max(128, lane_budget)
    if L <= lane_budget:
        return L                       # full dim: always legal
    return lane_budget                 # multiple of 128; ragged edge is masked


def _pick_sublane_block(M, bn, itemsize, target_bytes, sub_mult):
    """Sublane block: full dim if it fits, else a sub_mult-multiple budget."""
    cap = max(sub_mult, target_bytes // max(1, bn * itemsize))
    if M <= cap:
        return M                       # full dim: always legal
    return max(sub_mult, (cap // sub_mult) * sub_mult)     # edge masked


def _fatten_leading(tgt_k, out_block, itemsize, min_bytes, max_bytes):
    """Grow blocks along dims -3, -4, ... until >= min_bytes per output tile."""
    out_block = list(out_block)
    n = len(tgt_k)
    for d in range(n - 3, -1, -1):
        tile = math.prod(out_block) * itemsize
        if tile >= min_bytes:
            break
        want = -(-min_bytes // tile)           # ceil
        cap = max(1, max_bytes // tile)
        out_block[d] = max(1, min(tgt_k[d], want, cap))
    return tuple(out_block)


def _ensure_multicore_split(tgt_k, out_block, sub_mult, cores, out_bytes):
    """On multi-TC chips, make sure a non-trivial output yields >= 2 blocks."""
    n = len(out_block)
    grid = [pl.cdiv(tgt_k[d], out_block[d]) for d in range(n)]
    if cores < 2 or out_bytes < (1 << 20) or any(e >= 2 for e in grid):
        return tuple(out_block)
    out_block = list(out_block)
    if out_block[-2] >= 2 * sub_mult:
        out_block[-2] = max(sub_mult, (out_block[-2] // 2) // sub_mult * sub_mult)
    elif n >= 3 and max(out_block[:-2]) >= 2:
        d = max(range(n - 2), key=lambda i: out_block[i])
        out_block[d] = -(-out_block[d] // 2)
    # Never touch the lane block here: in the folded path it must stay equal
    # to the pre-tiled input row width.
    return tuple(out_block)


def torch_expand(x, shape, *, force_kernel=False):
    """Pallas equivalent of TorchExpand(shape)(x) == x.expand(*shape)."""
    shape = tuple(int(s) for s in shape)
    out_rank = len(shape)
    if out_rank < x.ndim:
        raise ValueError("expand: target rank must be >= input rank")
    n_new = out_rank - x.ndim
    x_padded_shape = (1,) * n_new + tuple(x.shape)

    # torch semantics: -1 keeps the input dim; -1 on a newly added leading dim
    # is an error; anything below -1 is invalid.
    tgt = []
    for i, s in enumerate(shape):
        if s == -1:
            if i < n_new:
                raise ValueError("expand: -1 not allowed for new leading dims")
            tgt.append(x_padded_shape[i])
        elif s < -1:
            raise ValueError(f"expand: invalid target size {s}")
        else:
            tgt.append(s)
    tgt = tuple(tgt)
    for xd, td in zip(x_padded_shape, tgt):
        if xd != td and xd != 1:
            raise ValueError(f"cannot expand dim of size {xd} to {td}")

    itemsize = jnp.dtype(x.dtype).itemsize
    out_bytes = math.prod(tgt) * itemsize

    # Fast path: nothing actually broadcasts -> metadata-only reshape.
    if x_padded_shape == tgt:
        return jnp.reshape(x, tgt)
    # Empty output: nothing for the kernel to do.
    if math.prod(tgt) == 0:
        return jnp.broadcast_to(jnp.reshape(x, x_padded_shape), tgt)
    # Tiny outputs: kernel-launch overhead dominates; let XLA do it.
    if out_bytes < _SMALL_OUTPUT_BYTES and not force_kernel:
        return jnp.broadcast_to(jnp.reshape(x, x_padded_shape), tgt)

    policy = _gen_policy()
    sub_mult = _sublane_multiple(itemsize)

    # --- Coalesce dims with identical broadcast status.
    x_c, tgt_c = _coalesce(x_padded_shape, tgt)

    # --- Optional lane-densifying fold of a trailing (broadcast, keep<128) pair.
    plan = _fold_plan(x_c, tgt_c)
    x_arr = jnp.reshape(x, x_c)
    if plan is not None:
        F, L, B = plan["F"], plan["L"], plan["B"]
        lead = x_c[:-2]
        # Pre-tile the small input row to F*L lanes in the wrapper (cheap).
        x_arr = jnp.reshape(
            jnp.broadcast_to(jnp.reshape(x_arr, lead + (1, L)), lead + (F, L)),
            lead + (F * L,))
        x_k = lead + (F * L,)
        tgt_k = tgt_c[:-2] + (B * L,)
    else:
        x_k, tgt_k = x_c, tgt_c

    # Pad to rank >= 2 for (sublane, lane) tiling.
    if len(tgt_k) < 2:
        pad = 2 - len(tgt_k)
        x_k = (1,) * pad + x_k
        tgt_k = (1,) * pad + tgt_k
        x_arr = jnp.reshape(x_arr, x_k)
    n = len(tgt_k)

    # "Pinned" dims: the input block index never moves (broadcast / folded).
    pinned = tuple(x_k[d] != tgt_k[d] for d in range(n))

    # --- Tile the trailing two dims, fatten leading dims, split for megacore.
    if plan is not None:
        bn = x_k[-1]                   # F*L: must match the pre-tiled row width
    else:
        bn = _pick_lane_block(tgt_k[-1], itemsize, policy["target"], sub_mult)
    bm = _pick_sublane_block(tgt_k[-2], bn, itemsize, policy["target"], sub_mult)
    out_block = [1] * n
    out_block[-1] = bn
    out_block[-2] = bm
    out_block = _fatten_leading(tgt_k, out_block, itemsize,
                                policy["min_tile"], policy["max_tile"])
    out_block = _ensure_multicore_split(tgt_k, out_block, sub_mult,
                                        policy["cores"], out_bytes)

    in_block = tuple(x_k[d] if pinned[d] else out_block[d] for d in range(n))

    # --- Grid: kept axes outer, pinned (broadcast) axes innermost so the kept
    #     input tile is only re-fetched when a kept axis actually advances.
    perm = ([d for d in range(n) if not pinned[d]]
            + [d for d in range(n) if pinned[d]])
    grid = tuple(pl.cdiv(tgt_k[d], out_block[d]) for d in perm)

    def out_index_map(*g):
        idx = [0] * n
        for a, d in enumerate(perm):
            idx[d] = g[a]
        return tuple(idx)

    def in_index_map(*g):
        idx = [0] * n
        for a, d in enumerate(perm):
            idx[d] = 0 if pinned[d] else g[a]
        return tuple(idx)

    in_tile_bytes = math.prod(in_block) * itemsize
    out_tile_bytes = math.prod(out_block) * itemsize
    vmem_limit = int(min(max(2 * (in_tile_bytes + out_tile_bytes) + (4 << 20),
                             16 << 20),
                         policy["vmem_cap"]))

    out_k = pl.pallas_call(
        _expand_kernel,
        out_shape=jax.ShapeDtypeStruct(tgt_k, x.dtype),
        grid=grid,
        in_specs=[pl.BlockSpec(in_block, in_index_map)],
        out_specs=pl.BlockSpec(out_block, out_index_map),
        compiler_params=pltpu.CompilerParams(
            # Pure data-parallel: every output tile is written exactly once.
            dimension_semantics=("parallel",) * len(grid),
            vmem_limit_bytes=vmem_limit,
        ),
    )(x_arr)

    # Metadata-only reshape back to the requested target shape.
    return jnp.reshape(out_k, tgt)


if __name__ == "__main__":
    key = jax.random.PRNGKey(0)
    k0, k1, k2, k3, k4 = jax.random.split(key, 5)

    # Primary example: broadcast a leading dim and an inner dim; the trailing
    # (broadcast 16, keep 16) pair is lane-densified by the fold path.
    x = jax.random.normal(k0, (1, 4, 1, 16), dtype=jnp.float32)
    target_shape = (2, 4, 16, 16)
    out = jax.block_until_ready(torch_expand(x, target_shape, force_kernel=True))
    ref = jnp.broadcast_to(x, target_shape)
    assert out.shape == target_shape and out.dtype == x.dtype
    assert bool(jnp.array_equal(out, ref)), "mismatch vs. reference broadcast"

    # Lane-aligned case: kept 128-lane last dim, broadcast sublane dim.
    x2 = jax.random.normal(k1, (8, 1, 128), dtype=jnp.float32)
    out2 = jax.block_until_ready(torch_expand(x2, (8, 64, 128), force_kernel=True))
    assert bool(jnp.array_equal(out2, jnp.broadcast_to(x2, (8, 64, 128))))

    # -1 semantics (keep input dim) + small non-aligned dims (tiny expansion,
    # fold gate correctly declines -> masked-store path, still exact).
    x3 = jax.random.normal(k2, (3, 1, 16), dtype=jnp.float32)
    out3 = jax.block_until_ready(torch_expand(x3, (3, 5, -1), force_kernel=True))
    assert bool(jnp.array_equal(out3, jnp.broadcast_to(x3, (3, 5, 16))))

    # bf16 + new leading dims added by the target shape (dtype-aware sublanes).
    x4 = jax.random.normal(k3, (4, 32), dtype=jnp.bfloat16)
    out4 = jax.block_until_ready(torch_expand(x4, (2, 3, 4, 32), force_kernel=True))
    assert bool(jnp.array_equal(out4, jnp.broadcast_to(x4, (2, 3, 4, 32))))

    # Multi-step grid: two broadcast dims + kept 128-lane last dim (exercises
    # pinned-innermost grid ordering and leading-dim fattening).
    x5 = jax.random.normal(k4, (1, 256, 1, 128), dtype=jnp.float32)
    out5 = jax.block_until_ready(
        torch_expand(x5, (4, 256, 8, 128), force_kernel=True))
    assert bool(jnp.array_equal(out5, jnp.broadcast_to(x5, (4, 256, 8, 128))))

    # Fast paths: no-expansion (reshape only) and small-output jnp fallback.
    out6 = jax.block_until_ready(torch_expand(x3, (3, 1, 16)))
    assert bool(jnp.array_equal(out6, x3))
    out7 = jax.block_until_ready(torch_expand(x3, (3, 5, 16)))
    assert bool(jnp.array_equal(out7, jnp.broadcast_to(x3, (3, 5, 16))))

    print("KERNEL_OK")
</pallas_src>

<mosaic_0001>
module attributes {stable_mosaic.version = 11 : i64} {
  func.func @_expand_kernel(%arg0: i32, %arg1: i32, %arg2: i32, %arg3: memref<1x4x128xf32, #tpu.memory_space<vmem>>, %arg4: memref<2x4x128xf32, #tpu.memory_space<vmem>>) attributes {dimension_semantics = [#tpu.dimension_semantics<parallel>, #tpu.dimension_semantics<parallel>, #tpu.dimension_semantics<parallel>], iteration_bounds = array<i64: 1, 1, 2>, scalar_prefetch = 0 : i64, scratch_operands = 0 : i64, tpu.core_type = #tpu.core_type<tc>, window_params = [{transform_indices = @transform_0, window_bounds = array<i64: 1, 4, 128>}, {transform_indices = @transform_1, window_bounds = array<i64: 2, 4, 128>}]} {
    %c0 = arith.constant 0 : index
    %c0_0 = arith.constant 0 : index
    %c0_1 = arith.constant 0 : index
    %0 = vector.load %arg3[%c0, %c0_0, %c0_1] : memref<1x4x128xf32, #tpu.memory_space<vmem>>, vector<1x4x128xf32>
    %1 = vector.shape_cast %0 : vector<1x4x128xf32> to vector<1x4x128xf32>
    %2 = vector.broadcast %1 : vector<1x4x128xf32> to vector<2x4x128xf32>
    %c0_2 = arith.constant 0 : index
    %c0_3 = arith.constant 0 : index
    %c0_4 = arith.constant 0 : index
    %3 = vector.load %arg4[%c0_2, %c0_3, %c0_4] : memref<2x4x128xf32, #tpu.memory_space<vmem>>, vector<2x4x128xf32>
    tpu.vector_store %arg4[%c0_2, %c0_3, %c0_4], %2 {strides = array<i32>} : memref<2x4x128xf32, #tpu.memory_space<vmem>>, vector<2x4x128xf32>,
    return
  }
  func.func @transform_0(%arg0: i32, %arg1: i32, %arg2: i32) -> (i32, i32, i32) {
    %c0_i32 = arith.constant 0 : i32
    %c0_i32_0 = arith.constant 0 : i32
    %c0_i32_1 = arith.constant 0 : i32
    return %c0_i32, %arg0, %c0_i32_0 : i32, i32, i32
  }
  func.func @transform_1(%arg0: i32, %arg1: i32, %arg2: i32) -> (i32, i32, i32) {
    %c0_i32 = arith.constant 0 : i32
    return %arg1, %arg0, %arg2 : i32, i32, i32
  }
}

</mosaic_0001>

<llo_original>
// kernel: tpu_custom_call.1
$region0: #{tpu_custom_call.1}
  #allocation0 [shape = 'u32[]', space=smem, size = 0x4, offset = 0x4, fixed_abs, tag = 'smem constant byte address 0x4 - core index']
  #allocation1 [shape = 'u32[144,128]{1,0:T(1,128)}', space=vmem, size = 0x12000, scoped, tag = 'internal scratch']
  %s0 = inlined_call_operand.hbm [shape: f32[1,4,128], index: 0, kind: input, shape index: {}]
  %s1 = inlined_call_operand.hbm [shape: f32[2,4,256], index: 1, kind: output, shape index: {}]
  %s2 = sld [smem:[#allocation0]]
  $region41: #{tpu_custom_call.1} parent=0
    _
  %s4 = ssub.s32 1, %s2
  %s5 = scalar_select 0, %s4, %s2
  $region1: #{tpu_custom_call.1} parent=0
    #allocation2 [shape = 'u8[2048]{0}', space=vmem, size = 0x800, scoped, tag = 'input window, operand 0, single buffered']
    #allocation3 [shape = 's32[2]{0}', space=sflag, size = 0x8, scoped, tag = 'scoped memory for tpu_custom_call.1']
    #allocation4 [shape = 's32[2]{0}', space=sflag, size = 0x8, scoped, tag = 'scoped memory for tpu_custom_call.1']
    #allocation5 [shape = 'u8[8192]{0}', space=vmem, size = 0x2000, scoped, tag = 'output window, operand 0']
    %6 = vsyncpa [#allocation3], 0
    %7 = vsyncpa [#allocation4], 0
    %s8 = scalar_lea.sflag [#allocation4], 1
    %9 = vsyncpa %s8, 0
    loop: start=0, step=1, limit=4
    $region2: #{tpu_custom_call.1} parent=1 // loop_pre_header
      _
    $region3: #{tpu_custom_call.1} parent=1 // loop_header
      %s11 = sphi 0, %s15
      %p12 = scmp.ge.s32.totalorder %s11, 4
      %s18 = sphi 0, %s37
      %s19 = sphi 0, %s33
      %s20 = sphi 0, %s29
      %s21 = sphi 0, %s18
      %s22 = sphi 0, %s19
      %s23 = sphi 0, %s20
      %s24 = sphi 0, %s21
      %s25 = sphi 0, %s22
      %s26 = sphi 0, %s23
      %s40 = sphi 0, %s42
      %s43 = sphi 0, %s40
      %s44 = sphi 0, %s43
      %s60 = sphi 0, %s44
      %s70 = sphi 0, %s72
      %s73 = sphi 0, %s70
      %s74 = sphi 0, %s73
      %s90 = sphi 0, %s74
    $region4: #{tpu_custom_call.1} parent=1 // loop_header_branch
      %14 = sbr.rel (%p12) target = $region8
    $region5: #{tpu_custom_call.1} parent=1 // loop_body
      %s16 = ssub.s32 %s11, 1
      %s17 = ssub.s32 %s11, 2
      %s27 = sadd.s32 1, %s20
      %p28 = scmp.ge.s32.totalorder %s27, 2
      %s29 = scalar_select %p28, 0, %s27
      %s30 = sadd.s32 1, %s19
      %s31 = scalar_select %p28, %s30, %s19
      %p32 = scmp.ge.s32.totalorder %s31, 1
      %s33 = scalar_select %p32, 0, %s31
      %s34 = sadd.s32 1, %s18
      %s35 = scalar_select %p32, %s34, %s18
      %p36 = scmp.ge.s32.totalorder %s35, 1
      %s37 = scalar_select %p36, 0, %s35
      %s38 = ssub.s32 %s18, %s37
      %p39 = scmp.eq.s32.totalorder %s38, 0
      %s41 = sadd.s32 %s40, 1
      %s42 = scalar_select %p39, %s40, %s41
      %p45 = pneg %p39
      %p46 = scmp.eq.s32.totalorder %s11, 1
      %p47 = por %p45, %p46
      %p48 = scmp.ne.s32.totalorder %s40, %s43
      %p49 = scmp.eq.s32.totalorder %s11, 0
      %p50 = por %p48, %p49
      %p51 = scmp.ne.s32.totalorder %s40, %s43
      %p52 = scmp.eq.s32.totalorder %s16, 1
      %p53 = por %p51, %p52
      %p54 = scmp.ne.s32.totalorder %s43, %s44
      %p55 = scmp.eq.s32.totalorder %s16, 0
      %p56 = por %p54, %p55
      %p57 = scmp.ne.s32.totalorder %s43, %s44
      %p58 = scmp.eq.s32.totalorder %s17, 1
      %p59 = por %p57, %p58
      %p61 = scmp.ne.s32.totalorder %s44, %s60
      %p62 = scmp.eq.s32.totalorder %s17, 0
      %p63 = por %p61, %p62
      %s64 = ssub.s32 %s19, %s33
      %s65 = ssub.s32 %s18, %s37
      %s66 = sor.u32 %s64, %s65
      %s67 = ssub.s32 %s20, %s29
      %s68 = sor.u32 %s66, %s67
      %p69 = scmp.eq.s32.totalorder %s68, 0
      %s71 = sadd.s32 %s70, 1
      %s72 = scalar_select %p69, %s70, %s71
      %p75 = pneg %p69
      %p76 = scmp.eq.s32.totalorder %s11, 1
      %p77 = por %p75, %p76
      %p78 = scmp.ne.s32.totalorder %s70, %s73
      %p79 = scmp.eq.s32.totalorder %s11, 0
      %p80 = por %p78, %p79
      %p81 = scmp.ne.s32.totalorder %s70, %s73
      %p82 = scmp.eq.s32.totalorder %s16, 1
      %p83 = por %p81, %p82
      %p84 = scmp.ne.s32.totalorder %s73, %s74
      %p85 = scmp.eq.s32.totalorder %s16, 0
      %p86 = por %p84, %p85
      %p87 = scmp.ne.s32.totalorder %s73, %s74
      %p88 = scmp.eq.s32.totalorder %s17, 1
      %p89 = por %p87, %p88
      %p91 = scmp.ne.s32.totalorder %s74, %s90
      %p92 = scmp.eq.s32.totalorder %s17, 0
      %p93 = por %p91, %p92
      %p94 = scmp.le.s32.totalorder 1, %s11
      %p95 = scmp.lt.s32.totalorder %s11, 3
      %p96 = pnand %p94, %p95
      %p97 = pneg %p96
      // Predicated region
      $region9: #{tpu_custom_call.1} parent=5 // pred_check
        _
      $region10: #{tpu_custom_call.1} parent=5 // pred_check_branch
        %99 = sbr.rel (%p96) target = $region12
      $region11: #{tpu_custom_call.1} parent=5 // pred_region
        %s100 = ssub.s32 %s11, 1
        // Predicated region
        $region13: #{tpu_custom_call.1} parent=11 // pred_check
          %p101 = pneg %p56
        $region14: #{tpu_custom_call.1} parent=11 // pred_check_branch
          %103 = sbr.rel (%p101) target = $region16
        $region15: #{tpu_custom_call.1} parent=11 // pred_region
          %s105 = ssub.s32 64, 64
          %106 = vsyncadd [#allocation3], %s105
          %s107 = smul.addr %s21, 64
          %s108 = scalar_lea.hbm %s0, %s107
          %s110 = sshll.u32 [#allocation2], 4
          %s111 = int_to_ptr.vmem [resolvable:$true] %s110
          %113 = dma.hbm_to_vmem [thread:$0]  %s108, 64, %s111, [#allocation3]
        $region16: #{tpu_custom_call.1} parent=11 // pred_fallthru
          _
      $region12: #{tpu_custom_call.1} parent=5 // pred_fallthru
        _
      %p114 = scmp.lt.s32.totalorder %s11, 2
      // Predicated region
      $region17: #{tpu_custom_call.1} parent=5 // pred_check
        %p115 = pneg %p114
      $region18: #{tpu_custom_call.1} parent=5 // pred_check_branch
        %117 = sbr.rel (%p115) target = $region20
      $region19: #{tpu_custom_call.1} parent=5 // pred_region
        _
      $region20: #{tpu_custom_call.1} parent=5 // pred_fallthru
        _
      %p118 = scmp.le.s32.totalorder 1, %s11
      %p119 = scmp.lt.s32.totalorder %s11, 3
      %p120 = pnand %p118, %p119
      %p121 = pneg %p120
      // Predicated region
      $region21: #{tpu_custom_call.1} parent=5 // pred_check
        _
      $region22: #{tpu_custom_call.1} parent=5 // pred_check_branch
        %123 = sbr.rel (%p120) target = $region24
      $region23: #{tpu_custom_call.1} parent=5 // pred_region
        %s124 = ssub.s32 %s11, 1
        // Predicated region
        $region25: #{tpu_custom_call.1} parent=23 // pred_check
          %p125 = pneg %p56
        $region26: #{tpu_custom_call.1} parent=23 // pred_check_branch
          %127 = sbr.rel (%p125) target = $region28
        $region27: #{tpu_custom_call.1} parent=23 // pred_region
          %128 = dma.done [#allocation3], 64
        $region28: #{tpu_custom_call.1} parent=23 // pred_fallthru
          _
        %p129 = pneg %p56
        %p130 = pneg %p53
        %p131 = pneg %p86
        %p132 = pneg %p83
        %s133 = sand.u32 %s73, 1
        %s134 = scalar_lea.sflag [#allocation4], %s133
        %s135 = sand.u32 %s73, 1
        %s136 = smul.addr %s135, 8
        %s137 = scalar_lea.vmem [#allocation5], %s136
        %s138 = smul.u32 2, %s22
        %v139 = vld [vmem:[#allocation2] sm:$0xf]
        %140 = vst [vmem:[%s137] sm:$0xf] %v139
        %141 = vst [vmem:[%s137 + $0x4] sm:$0xf] %v139
        %s142 = sand.u32 %s73, 1
        %s143 = scalar_lea.sflag [#allocation4], %s142
        %s144 = sand.u32 %s73, 1
        %s145 = smul.addr %s144, 8
        %s146 = scalar_lea.vmem [#allocation5], %s145
        // Predicated region
        $region29: #{tpu_custom_call.1} parent=23 // pred_check
          %p147 = pneg %p83
        $region30: #{tpu_custom_call.1} parent=23 // pred_check_branch
          %149 = sbr.rel (%p147) target = $region32
        $region31: #{tpu_custom_call.1} parent=23 // pred_region
          %s150 = smul.u32 2, %s22
          %s152 = ssub.s32 128, 128
          %153 = vsyncadd %s143, %s152
          %s154 = smul.addr %s21, 2
          %s155 = sadd.s32 %s23, %s154
          %s156 = smul.addr %s150, 2
          %s157 = sadd.s32 %s155, %s156
          %s158 = smul.addr %s157, 64
          %s159 = scalar_lea.hbm %s1, %s158
          %s160 = sshll.u32 %s146, 4
          %s161 = int_to_ptr.vmem [resolvable:$true] %s160
          %166 = dma.vmem_to_hbm [thread:$0]  %s161, 128, %s159, %s143, 64, 128, 4
        $region32: #{tpu_custom_call.1} parent=23 // pred_fallthru
          _
      $region24: #{tpu_custom_call.1} parent=5 // pred_fallthru
        _
      %p167 = scmp.le.s32.totalorder 2, %s11
      // Predicated region
      $region33: #{tpu_custom_call.1} parent=5 // pred_check
        %p168 = pneg %p167
      $region34: #{tpu_custom_call.1} parent=5 // pred_check_branch
        %170 = sbr.rel (%p168) target = $region36
      $region35: #{tpu_custom_call.1} parent=5 // pred_region
        %s171 = ssub.s32 %s11, 2
        // Predicated region
        $region37: #{tpu_custom_call.1} parent=35 // pred_check
          %p172 = pneg %p89
        $region38: #{tpu_custom_call.1} parent=35 // pred_check_branch
          %174 = sbr.rel (%p172) target = $region40
        $region39: #{tpu_custom_call.1} parent=35 // pred_region
          %s175 = sand.u32 %s74, 1
          %s176 = scalar_lea.sflag [#allocation4], %s175
          %s177 = sand.u32 %s74, 1
          %s178 = smul.addr %s177, 8
          %s179 = scalar_lea.vmem [#allocation5], %s178
          %180 = dma.done %s176, 128
        $region40: #{tpu_custom_call.1} parent=35 // pred_fallthru
          _
      $region36: #{tpu_custom_call.1} parent=5 // pred_fallthru
        _
    $region6: #{tpu_custom_call.1} parent=1 // loop_footer
      %s15 = sadd.s32 1, %s11
    $region7: #{tpu_custom_call.1} parent=1 // loop_footer_branch
      %10 = sbr.rel target = $region3
    $region8: #{tpu_custom_call.1} parent=1 // loop_exit
      _
    %181 = vsyncpa [#allocation3], 1
    %s182 = scalar_lea.sflag [#allocation3], 1
    %183 = vsyncpa %s182, 1
    %184 = vsyncpa [#allocation4], 1
    %s185 = scalar_lea.sflag [#allocation4], 1
    %186 = vsyncpa %s185, 1

</llo_original>
